<compile_context>
chip_gen: v5e
topology: v5e:2x2
jax: 0.10.0
libtpu: 0.0.40
codegen_flags: <defaults>
</compile_context>

<pallas_src>
import functools

import jax
import jax.numpy as jnp
from jax import lax
from jax.experimental import pallas as pl
from jax.experimental.pallas import tpu as pltpu


def _conv_window_kernel(x_ref, w_ref, b_ref, o_ref, xp_ref, *, use_bf16):
    """Fused im2col conv for one batch tile.

    x_ref  : (BT, L,  E)        unpadded embeddings for BT sentences
    w_ref  : (K,  O,  E)        conv weight, window-major
    b_ref  : (O,  1)            bias
    o_ref  : (O,  BT*L_out)     lane-dense conv output for this tile
    xp_ref : (BT, L+2, E)       VMEM scratch: sequence-padded activations
    """
    bt, l_in, e = x_ref.shape
    k_win, o_ch, _ = w_ref.shape
    lp = xp_ref.shape[1]
    l_out = lp - k_win + 1

    # Build the sequence padding (1 zero row each side) in VMEM instead of an
    # HBM-round-trip jnp.pad in the wrapper.  Zero rows are rewritten every
    # step (cheap) so the kernel is safe under "parallel" grid sharding.
    zero_row = jnp.zeros((bt, 1, e), xp_ref.dtype)
    xp_ref[:, 0:1, :] = zero_row
    xp_ref[:, lp - 1:lp, :] = zero_row
    xp_ref[:, pl.ds(1, l_in), :] = x_ref[...]

    op_dtype = jnp.bfloat16 if use_bf16 else jnp.float32
    w = w_ref[...].astype(op_dtype)          # (K, O, E), loaded once per step
    bias = b_ref[...]                        # (O, 1)

    acc = jnp.zeros((o_ch, bt * l_out), jnp.float32)
    for k in range(k_win):                   # static unroll, K is tiny (e.g. 3)
        # Shifted window k for every sentence in the tile, flattened so the
        # whole batch tile streams through the MXU in one dot.
        xk = xp_ref[:, k:k + l_out, :].reshape(bt * l_out, e).astype(op_dtype)
        acc = acc + lax.dot_general(
            w[k], xk,
            dimension_numbers=(((1,), (1,)), ((), ())),
            preferred_element_type=jnp.float32)      # (O, BT*L_out)

    o_ref[...] = (acc + bias).astype(o_ref.dtype)


def _pick_batch_tile(batch, L, Lp, L_out, E, O, K, *,
                     budget_bytes=8 << 20, max_bt=512):
    """Size the batch tile from a VMEM budget and return (BT, num_tiles)."""
    cdiv = lambda a, b: -(-a // b)
    itemsize = 4
    per_sentence = (2 * L * E            # double-buffered input tile
                    + Lp * E             # padded VMEM scratch
                    + 2 * O * L_out      # double-buffered output tile
                    + (K + 1) * L_out * E  # shifted-slice / reshape temporaries
                    ) * itemsize
    bt = max(1, budget_bytes // max(per_sentence, 1))
    bt = min(bt, max_bt, batch)
    if batch > 1:
        # Keep >= 2 grid steps: pipelining overlap + v7x megacore sharding.
        bt = min(bt, cdiv(batch, 2))
    bt = max(int(bt), 1)
    num_tiles = cdiv(batch, bt)
    if num_tiles > 1 and num_tiles % 2:
        # Even grid length so v7x's two TensorCores stay balanced.
        num_tiles += 1
        bt = cdiv(batch, num_tiles)
    return int(bt), int(num_tiles)


@functools.partial(jax.jit, static_argnames=("window_size", "use_bf16"))
def cnn_forward(embedding, weight, bias, *, window_size, use_bf16=False):
    """Forward pass of _CNN.

    embedding: (B, 1, L, E)   -- NCHW, in_channels = 1
    weight   : (O, 1, K, E)   -- Conv2d weight
    bias     : (O,)
    returns  : (B, O, L + 2 - K + 1, 1)  -- NCHW conv output
    """
    B, C, L, E = embedding.shape
    O, _, K, _ = weight.shape
    assert C == 1 and K == window_size

    Lp = L + 2                   # padding=(1, 0): pad the sequence axis by 1 each side
    L_out = Lp - K + 1

    x = embedding[:, 0]                                  # (B, L, E) -- free squeeze
    w_km = jnp.transpose(weight[:, 0], (1, 0, 2))        # (K, O, E), tiny
    b_col = bias.reshape(O, 1)                           # (O, 1)

    BT, G = _pick_batch_tile(B, L, Lp, L_out, E, O, K)
    B_pad = BT * G
    if B_pad != B:
        # Small zero pad of the batch axis so every grid block is full-size.
        x = jnp.pad(x, ((0, B_pad - B), (0, 0), (0, 0)))

    kernel = functools.partial(_conv_window_kernel, use_bf16=use_bf16)

    out = pl.pallas_call(
        kernel,
        out_shape=jax.ShapeDtypeStruct((G, O, BT * L_out), embedding.dtype),
        grid_spec=pltpu.PrefetchScalarGridSpec(
            num_scalar_prefetch=0,
            grid=(G,),
            in_specs=[
                pl.BlockSpec((BT, L, E), lambda i: (i, 0, 0)),   # batch tile
                pl.BlockSpec((K, O, E), lambda i: (0, 0, 0)),    # full weight
                pl.BlockSpec((O, 1), lambda i: (0, 0)),          # bias
            ],
            # Squeezed leading dim -> kernel sees a lane-dense (O, BT*L_out) block.
            out_specs=pl.BlockSpec((None, O, BT * L_out), lambda i: (i, 0, 0)),
            scratch_shapes=[pltpu.VMEM((BT, Lp, E), embedding.dtype)],
        ),
        compiler_params=pltpu.CompilerParams(
            dimension_semantics=("parallel",)),
    )(x, w_km, b_col)

    # (G, O, BT*L_out) -> (B, O, L_out, 1); small output-side transpose only.
    out = out.reshape(G, O, BT, L_out).transpose(0, 2, 1, 3).reshape(B_pad, O, L_out)
    return out[:B, :, :, None]


def _reference(embedding, weight, bias):
    # Plain-JAX reference conv for verification.
    return lax.conv_general_dilated(
        embedding, weight, window_strides=(1, 1),
        padding=((1, 1), (0, 0)),
        dimension_numbers=("NCHW", "OIHW", "NCHW"),
    ) + bias.reshape(1, -1, 1, 1)


if __name__ == "__main__":
    # Small synthetic config (mirrors the module's __init__):
    #   max_length=16, word_size=24, pos_size=4  -> in_width = 24 + 2*4 = 32
    #   window_size=3, sen_hidden_size=32
    B = 2
    max_length = 16
    word_size = 24
    pos_size = 4
    window_size = 3
    sen_hidden_size = 32
    in_width = word_size + 2 * pos_size

    key = jax.random.PRNGKey(0)
    k_emb, k_w, k_b = jax.random.split(key, 3)

    embedding = jax.random.normal(
        k_emb, (B, 1, max_length, in_width), dtype=jnp.float32)

    # Deterministic Conv2d-style init: U(-1/sqrt(fan_in), 1/sqrt(fan_in))
    fan_in = 1 * window_size * in_width
    bound = 1.0 / (fan_in ** 0.5)
    weight = jax.random.uniform(
        k_w, (sen_hidden_size, 1, window_size, in_width),
        minval=-bound, maxval=bound, dtype=jnp.float32)
    bias = jax.random.uniform(
        k_b, (sen_hidden_size,), minval=-bound, maxval=bound,
        dtype=jnp.float32)

    out = cnn_forward(embedding, weight, bias, window_size=window_size)
    out = jax.block_until_ready(out)

    ref = _reference(embedding, weight, bias)
    assert out.shape == ref.shape == (
        B, sen_hidden_size, max_length + 2 - window_size + 1, 1)
    assert jnp.allclose(out, ref, atol=1e-4, rtol=1e-4)

    print("KERNEL_OK")
</pallas_src>

<mosaic_0001>
module attributes {stable_mosaic.version = 11 : i64} {
  func.func @_conv_window_kernel(%arg0: i32, %arg1: memref<1x16x32xf32, #tpu.memory_space<vmem>>, %arg2: memref<3x32x32xf32, #tpu.memory_space<vmem>>, %arg3: memref<32x1xf32, #tpu.memory_space<vmem>>, %arg4: memref<1x32x16xf32, #tpu.memory_space<vmem>>, %arg5: memref<1x18x32xf32, #tpu.memory_space<vmem>>) attributes {dimension_semantics = [#tpu.dimension_semantics<parallel>], iteration_bounds = array<i64: 2>, scalar_prefetch = 0 : i64, scratch_operands = 1 : i64, tpu.core_type = #tpu.core_type<tc>, window_params = [{transform_indices = @transform_0, window_bounds = array<i64: 1, 16, 32>}, {pipeline_mode = #tpu.pipeline_mode<synchronous>, transform_indices = @transform_1, window_bounds = array<i64: 3, 32, 32>}, {pipeline_mode = #tpu.pipeline_mode<synchronous>, transform_indices = @transform_2, window_bounds = array<i64: 32, 1>}, {transform_indices = @transform_3, window_bounds = array<i64: 1, 32, 16>}]} {
    %cst = arith.constant 0.000000e+00 : f32
    %0 = vector.broadcast %cst : f32 to vector<1x1x32xf32>
    %c0 = arith.constant 0 : index
    %c0_0 = arith.constant 0 : index
    %c0_1 = arith.constant 0 : index
    %1 = vector.load %arg5[%c0, %c0_0, %c0_1] : memref<1x18x32xf32, #tpu.memory_space<vmem>>, vector<1x1x32xf32>
    tpu.vector_store %arg5[%c0, %c0_0, %c0_1], %0 {strides = array<i32>} : memref<1x18x32xf32, #tpu.memory_space<vmem>>, vector<1x1x32xf32>,
    %c0_2 = arith.constant 0 : index
    %c17 = arith.constant 17 : index
    %c0_3 = arith.constant 0 : index
    %2 = vector.load %arg5[%c0_2, %c17, %c0_3] : memref<1x18x32xf32, #tpu.memory_space<vmem>>, vector<1x1x32xf32>
    tpu.vector_store %arg5[%c0_2, %c17, %c0_3], %0 {strides = array<i32>} : memref<1x18x32xf32, #tpu.memory_space<vmem>>, vector<1x1x32xf32>,
    %c0_4 = arith.constant 0 : index
    %c0_5 = arith.constant 0 : index
    %c0_6 = arith.constant 0 : index
    %3 = vector.load %arg1[%c0_4, %c0_5, %c0_6] : memref<1x16x32xf32, #tpu.memory_space<vmem>>, vector<1x16x32xf32>
    %c0_7 = arith.constant 0 : index
    %c1 = arith.constant 1 : index
    %c0_8 = arith.constant 0 : index
    %4 = vector.load %arg5[%c0_7, %c1, %c0_8] : memref<1x18x32xf32, #tpu.memory_space<vmem>>, vector<1x16x32xf32>
    tpu.vector_store %arg5[%c0_7, %c1, %c0_8], %3 {strides = array<i32>} : memref<1x18x32xf32, #tpu.memory_space<vmem>>, vector<1x16x32xf32>,
    %c0_9 = arith.constant 0 : index
    %c0_10 = arith.constant 0 : index
    %c0_11 = arith.constant 0 : index
    %5 = vector.load %arg2[%c0_9, %c0_10, %c0_11] : memref<3x32x32xf32, #tpu.memory_space<vmem>>, vector<3x32x32xf32>
    %c0_12 = arith.constant 0 : index
    %c0_13 = arith.constant 0 : index
    %6 = vector.load %arg3[%c0_12, %c0_13] : memref<32x1xf32, #tpu.memory_space<vmem>>, vector<32x1xf32>
    %cst_14 = arith.constant 0.000000e+00 : f32
    %7 = vector.broadcast %cst_14 : f32 to vector<32x16xf32>
    %c0_15 = arith.constant 0 : index
    %c0_16 = arith.constant 0 : index
    %c0_17 = arith.constant 0 : index
    %8 = vector.load %arg5[%c0_15, %c0_16, %c0_17] : memref<1x18x32xf32, #tpu.memory_space<vmem>>, vector<1x16x32xf32>
    %9 = vector.shape_cast %8 : vector<1x16x32xf32> to vector<16x32xf32>
    %10 = vector.extract_strided_slice %5 {offsets = [0, 0, 0], sizes = [1, 32, 32], strides = [1, 1, 1]} : vector<3x32x32xf32> to vector<1x32x32xf32>
    %11 = vector.shape_cast %10 : vector<1x32x32xf32> to vector<32x32xf32>
    %cst_18 = arith.constant dense<0.000000e+00> : vector<32x16xf32>
    %12 = tpu.matmul %11, %9, %cst_18 {dimension_numbers = #tpu.dot_dimension_numbers<[1], [1], [0], [0], [0, 0, 1, 0], [], []>} : vector<32x32xf32>, vector<16x32xf32>, vector<32x16xf32> -> vector<32x16xf32>
    %13 = arith.addf %7, %12 : vector<32x16xf32>
    %c0_19 = arith.constant 0 : index
    %c1_20 = arith.constant 1 : index
    %c0_21 = arith.constant 0 : index
    %14 = vector.load %arg5[%c0_19, %c1_20, %c0_21] : memref<1x18x32xf32, #tpu.memory_space<vmem>>, vector<1x16x32xf32>
    %15 = vector.shape_cast %14 : vector<1x16x32xf32> to vector<16x32xf32>
    %16 = vector.extract_strided_slice %5 {offsets = [1, 0, 0], sizes = [1, 32, 32], strides = [1, 1, 1]} : vector<3x32x32xf32> to vector<1x32x32xf32>
    %17 = vector.shape_cast %16 : vector<1x32x32xf32> to vector<32x32xf32>
    %cst_22 = arith.constant dense<0.000000e+00> : vector<32x16xf32>
    %18 = tpu.matmul %17, %15, %cst_22 {dimension_numbers = #tpu.dot_dimension_numbers<[1], [1], [0], [0], [0, 0, 1, 0], [], []>} : vector<32x32xf32>, vector<16x32xf32>, vector<32x16xf32> -> vector<32x16xf32>
    %19 = arith.addf %13, %18 : vector<32x16xf32>
    %c0_23 = arith.constant 0 : index
    %c2 = arith.constant 2 : index
    %c0_24 = arith.constant 0 : index
    %20 = vector.load %arg5[%c0_23, %c2, %c0_24] : memref<1x18x32xf32, #tpu.memory_space<vmem>>, vector<1x16x32xf32>
    %21 = vector.shape_cast %20 : vector<1x16x32xf32> to vector<16x32xf32>
    %22 = vector.extract_strided_slice %5 {offsets = [2, 0, 0], sizes = [1, 32, 32], strides = [1, 1, 1]} : vector<3x32x32xf32> to vector<1x32x32xf32>
    %23 = vector.shape_cast %22 : vector<1x32x32xf32> to vector<32x32xf32>
    %cst_25 = arith.constant dense<0.000000e+00> : vector<32x16xf32>
    %24 = tpu.matmul %23, %21, %cst_25 {dimension_numbers = #tpu.dot_dimension_numbers<[1], [1], [0], [0], [0, 0, 1, 0], [], []>} : vector<32x32xf32>, vector<16x32xf32>, vector<32x16xf32> -> vector<32x16xf32>
    %25 = arith.addf %19, %24 : vector<32x16xf32>
    %26 = vector.broadcast %6 : vector<32x1xf32> to vector<32x16xf32>
    %27 = arith.addf %25, %26 : vector<32x16xf32>
    %c0_26 = arith.constant 0 : index
    %c0_27 = arith.constant 0 : index
    %c0_28 = arith.constant 0 : index
    %28 = vector.load %arg4[%c0_26, %c0_27, %c0_28] : memref<1x32x16xf32, #tpu.memory_space<vmem>>, vector<1x32x16xf32>
    %29 = vector.shape_cast %28 : vector<1x32x16xf32> to vector<32x16xf32>
    %30 = vector.shape_cast %27 : vector<32x16xf32> to vector<1x32x16xf32>
    tpu.vector_store %arg4[%c0_26, %c0_27, %c0_28], %30 {strides = array<i32>} : memref<1x32x16xf32, #tpu.memory_space<vmem>>, vector<1x32x16xf32>,
    return
  }
  func.func @transform_0(%arg0: i32) -> (i32, i32, i32) {
    %c0_i32 = arith.constant 0 : i32
    %c0_i32_0 = arith.constant 0 : i32
    %c0_i32_1 = arith.constant 0 : i32
    return %arg0, %c0_i32, %c0_i32_0 : i32, i32, i32
  }
  func.func @transform_1(%arg0: i32) -> (i32, i32, i32) {
    %c0_i32 = arith.constant 0 : i32
    %c0_i32_0 = arith.constant 0 : i32
    %c0_i32_1 = arith.constant 0 : i32
    %c0_i32_2 = arith.constant 0 : i32
    return %c0_i32, %c0_i32_0, %c0_i32_1 : i32, i32, i32
  }
  func.func @transform_2(%arg0: i32) -> (i32, i32) {
    %c0_i32 = arith.constant 0 : i32
    %c0_i32_0 = arith.constant 0 : i32
    %c0_i32_1 = arith.constant 0 : i32
    return %c0_i32, %c0_i32_0 : i32, i32
  }
  func.func @transform_3(%arg0: i32) -> (i32, i32, i32) {
    %c0_i32 = arith.constant 0 : i32
    %c0_i32_0 = arith.constant 0 : i32
    %c0_i32_1 = arith.constant 0 : i32
    return %arg0, %c0_i32, %c0_i32_0 : i32, i32, i32
  }
}

</mosaic_0001>

<llo_original>
// kernel: cnn_forward.1
$region0: #{cnn_forward.1}
  #allocation0 [shape = 'u32[]', space=smem, size = 0x4, offset = 0x4, fixed_abs, tag = 'smem constant byte address 0x4 - core index']
  #allocation1 [shape = 'u32[72,128]{1,0:T(1,128)}', space=vmem, size = 0x9000, scoped, tag = 'internal scratch']
  #allocation2 [shape = 'f32[1,18,32]{2,1,0:T(8,128)}', space=vmem, size = 0x3000, scoped, tag = 'scratch operand']
  %s0 = inlined_call_operand.vmem [shape: f32[2,16,32], index: 0, kind: input, shape index: {}]
  %s1 = inlined_call_operand.vmem [shape: f32[3,32,32], index: 1, kind: input, shape index: {}]
  %s2 = inlined_call_operand.vmem [shape: f32[32,1], index: 2, kind: input, shape index: {}]
  %s3 = inlined_call_operand.vmem [shape: f32[2,32,16], index: 3, kind: output, shape index: {}]
  %s4 = sld [smem:[#allocation0]]
  $region45: #{cnn_forward.1} parent=0
    _
  %s6 = ssub.s32 1, %s4
  %s7 = scalar_select 0, %s6, %s4
  loop: start=0, step=1, limit=4
  $region2: #{cnn_forward.1} parent=0 // loop_pre_header
    _
  $region3: #{cnn_forward.1} parent=0 // loop_header
    %s9 = sphi 0, %s13
    %p10 = scmp.ge.s32.totalorder %s9, 4
    %s19 = sphi 0, %s21
    %s22 = sphi 0, %s19
    %s23 = sphi 0, %s22
    %s39 = sphi 0, %s23
    %s43 = sphi 0, %s43
    %s45 = sphi 0, %s43
    %s46 = sphi 0, %s45
    %s60 = sphi 0, %s46
    %s64 = sphi 0, %s64
    %s66 = sphi 0, %s64
    %s67 = sphi 0, %s66
    %s81 = sphi 0, %s67
    %s87 = sphi 0, %s89
    %s90 = sphi 0, %s87
    %s91 = sphi 0, %s90
    %s107 = sphi 0, %s91
  $region4: #{cnn_forward.1} parent=0 // loop_header_branch
    %12 = sbr.rel (%p10) target = $region8
  $region5: #{cnn_forward.1} parent=0 // loop_body
    %s14 = ssub.s32 %s9, 1
    %s15 = ssub.s32 %s9, 2
    %s16 = sadd.s32 %s9, 1
    %s17 = ssub.s32 %s9, %s16
    %p18 = scmp.eq.s32.totalorder %s17, 0
    %s20 = sadd.s32 %s19, 1
    %s21 = scalar_select %p18, %s19, %s20
    %p24 = pneg %p18
    %p25 = scmp.eq.s32.totalorder %s9, 1
    %p26 = por %p24, %p25
    %p27 = scmp.ne.s32.totalorder %s19, %s22
    %p28 = scmp.eq.s32.totalorder %s9, 0
    %p29 = por %p27, %p28
    %p30 = scmp.ne.s32.totalorder %s19, %s22
    %p31 = scmp.eq.s32.totalorder %s14, 1
    %p32 = por %p30, %p31
    %p33 = scmp.ne.s32.totalorder %s22, %s23
    %p34 = scmp.eq.s32.totalorder %s14, 0
    %p35 = por %p33, %p34
    %p36 = scmp.ne.s32.totalorder %s22, %s23
    %p37 = scmp.eq.s32.totalorder %s15, 1
    %p38 = por %p36, %p37
    %p40 = scmp.ne.s32.totalorder %s23, %s39
    %p41 = scmp.eq.s32.totalorder %s15, 0
    %p42 = por %p40, %p41
    %s44 = sadd.s32 %s43, 1
    %p47 = scmp.eq.s32.totalorder %s9, 1
    %p48 = scmp.ne.s32.totalorder %s43, %s45
    %p49 = scmp.eq.s32.totalorder %s9, 0
    %p50 = por %p48, %p49
    %p51 = scmp.ne.s32.totalorder %s43, %s45
    %p52 = scmp.eq.s32.totalorder %s14, 1
    %p53 = por %p51, %p52
    %p54 = scmp.ne.s32.totalorder %s45, %s46
    %p55 = scmp.eq.s32.totalorder %s14, 0
    %p56 = por %p54, %p55
    %p57 = scmp.ne.s32.totalorder %s45, %s46
    %p58 = scmp.eq.s32.totalorder %s15, 1
    %p59 = por %p57, %p58
    %p61 = scmp.ne.s32.totalorder %s46, %s60
    %p62 = scmp.eq.s32.totalorder %s15, 0
    %p63 = por %p61, %p62
    %s65 = sadd.s32 %s64, 1
    %p68 = scmp.eq.s32.totalorder %s9, 1
    %p69 = scmp.ne.s32.totalorder %s64, %s66
    %p70 = scmp.eq.s32.totalorder %s9, 0
    %p71 = por %p69, %p70
    %p72 = scmp.ne.s32.totalorder %s64, %s66
    %p73 = scmp.eq.s32.totalorder %s14, 1
    %p74 = por %p72, %p73
    %p75 = scmp.ne.s32.totalorder %s66, %s67
    %p76 = scmp.eq.s32.totalorder %s14, 0
    %p77 = por %p75, %p76
    %p78 = scmp.ne.s32.totalorder %s66, %s67
    %p79 = scmp.eq.s32.totalorder %s15, 1
    %p80 = por %p78, %p79
    %p82 = scmp.ne.s32.totalorder %s67, %s81
    %p83 = scmp.eq.s32.totalorder %s15, 0
    %p84 = por %p82, %p83
    %s85 = ssub.s32 %s9, %s16
    %p86 = scmp.eq.s32.totalorder %s85, 0
    %s88 = sadd.s32 %s87, 1
    %s89 = scalar_select %p86, %s87, %s88
    %p92 = pneg %p86
    %p93 = scmp.eq.s32.totalorder %s9, 1
    %p94 = por %p92, %p93
    %p95 = scmp.ne.s32.totalorder %s87, %s90
    %p96 = scmp.eq.s32.totalorder %s9, 0
    %p97 = por %p95, %p96
    %p98 = scmp.ne.s32.totalorder %s87, %s90
    %p99 = scmp.eq.s32.totalorder %s14, 1
    %p100 = por %p98, %p99
    %p101 = scmp.ne.s32.totalorder %s90, %s91
    %p102 = scmp.eq.s32.totalorder %s14, 0
    %p103 = por %p101, %p102
    %p104 = scmp.ne.s32.totalorder %s90, %s91
    %p105 = scmp.eq.s32.totalorder %s15, 1
    %p106 = por %p104, %p105
    %p108 = scmp.ne.s32.totalorder %s91, %s107
    %p109 = scmp.eq.s32.totalorder %s15, 0
    %p110 = por %p108, %p109
    %p111 = scmp.le.s32.totalorder 1, %s9
    %p112 = scmp.lt.s32.totalorder %s9, 3
    %p113 = pnand %p111, %p112
    %p114 = pneg %p113
    // Predicated region
    $region9: #{cnn_forward.1} parent=5 // pred_check
      _
    $region10: #{cnn_forward.1} parent=5 // pred_check_branch
      %116 = sbr.rel (%p113) target = $region12
    $region11: #{cnn_forward.1} parent=5 // pred_region
      %s117 = ssub.s32 %s9, 1
      // Predicated region
      $region13: #{cnn_forward.1} parent=11 // pred_check
        %p118 = pneg %p56
      $region14: #{cnn_forward.1} parent=11 // pred_check_branch
        %120 = sbr.rel (%p118) target = $region16
      $region15: #{cnn_forward.1} parent=11 // pred_region
        _
      $region16: #{cnn_forward.1} parent=11 // pred_fallthru
        _
      // Predicated region
      $region17: #{cnn_forward.1} parent=11 // pred_check
        %p121 = pneg %p77
      $region18: #{cnn_forward.1} parent=11 // pred_check_branch
        %123 = sbr.rel (%p121) target = $region20
      $region19: #{cnn_forward.1} parent=11 // pred_region
        _
      $region20: #{cnn_forward.1} parent=11 // pred_fallthru
        _
    $region12: #{cnn_forward.1} parent=5 // pred_fallthru
      _
    %p124 = scmp.lt.s32.totalorder %s9, 2
    // Predicated region
    $region21: #{cnn_forward.1} parent=5 // pred_check
      %p125 = pneg %p124
    $region22: #{cnn_forward.1} parent=5 // pred_check_branch
      %127 = sbr.rel (%p125) target = $region24
    $region23: #{cnn_forward.1} parent=5 // pred_region
      // Predicated region
      $region25: #{cnn_forward.1} parent=23 // pred_check
        %p128 = pneg %p29
      $region26: #{cnn_forward.1} parent=23 // pred_check_branch
        %130 = sbr.rel (%p128) target = $region28
      $region27: #{cnn_forward.1} parent=23 // pred_region
        %p131 = scmp.lt.s32.totalorder %s9, 1
        %s132 = scalar_select %p131, %s9, 1
        %s133 = smul.addr %s132, 2
        %s134 = smul.addr %s133, 8
        %s135 = scalar_lea.vmem %s0, %s134
      $region28: #{cnn_forward.1} parent=23 // pred_fallthru
        _
    $region24: #{cnn_forward.1} parent=5 // pred_fallthru
      _
    %p136 = scmp.le.s32.totalorder 1, %s9
    %p137 = scmp.lt.s32.totalorder %s9, 3
    %p138 = pnand %p136, %p137
    %p139 = pneg %p138
    // Predicated region
    $region29: #{cnn_forward.1} parent=5 // pred_check
      _
    $region30: #{cnn_forward.1} parent=5 // pred_check_branch
      %141 = sbr.rel (%p138) target = $region32
    $region31: #{cnn_forward.1} parent=5 // pred_region
      %s142 = ssub.s32 %s9, 1
      %p143 = scmp.lt.s32.totalorder %s14, 1
      %s144 = scalar_select %p143, %s14, 1
      %s145 = smul.addr %s144, 2
      %s146 = smul.addr %s145, 8
      %s147 = scalar_lea.vmem %s0, %s146
      %p148 = pneg %p35
      %p149 = pneg %p32
      %p150 = pneg %p56
      %p151 = pneg %p53
      %p152 = pneg %p77
      %p153 = pneg %p74
      %p154 = pneg %p103
      %p155 = pneg %p100
      %p156 = scmp.lt.s32.totalorder %s14, 1
      %s157 = scalar_select %p156, %s14, 1
      %s158 = smul.addr %s157, 4
      %s159 = smul.addr %s158, 8
      %s160 = scalar_lea.vmem %s3, %s159
      %p161 = scmp.lt.s32.totalorder %s14, 1
      %s162 = scalar_select %p161, %s14, 1
      %s163 = smul.addr %s162, 2
      %s164 = smul.addr %s163, 8
      %s165 = scalar_lea.vmem %s0, %s164
      %p166 = scmp.lt.s32.totalorder %s14, 1
      %s167 = scalar_select %p166, %s14, 1
      %s168 = smul.addr %s167, 4
      %s169 = smul.addr %s168, 8
      %s170 = scalar_lea.vmem %s3, %s169
      %vm171 = vcmask 253952
      %172 = vst.msk [vmem:[#allocation2] sm:$0x1] %vm171, 0.0
      %173 = vst.msk [vmem:[#allocation2 + $0x11] sm:$0x1] %vm171, 0.0
      %v174 = vld [vmem:[%s165] sm:$0xff]
      %v175 = vld [vmem:[%s165 + $0x8] sm:$0xff]
      %vm176 = vcmask 261120
      %177 = vst.msk [vmem:[#allocation2 + $0x1] sm:$0xff] %vm176, %v174
      %178 = vst.msk [vmem:[#allocation2 + $0x9] sm:$0xff] %vm176, %v175
      %v179 = vld [vmem:[%s1] sm:$0xff]
      %v180 = vld [vmem:[%s1 + $0x8] sm:$0xff]
      %v181 = vld [vmem:[%s1 + $0x10] sm:$0xff]
      %v182 = vld [vmem:[%s1 + $0x18] sm:$0xff]
      %v183 = vld [vmem:[%s1 + $0x20] sm:$0xff]
      %v184 = vld [vmem:[%s1 + $0x28] sm:$0xff]
      %v185 = vld [vmem:[%s1 + $0x30] sm:$0xff]
      %v186 = vld [vmem:[%s1 + $0x38] sm:$0xff]
      %v187 = vld [vmem:[%s1 + $0x40] sm:$0xff]
      %v188 = vld [vmem:[%s1 + $0x48] sm:$0xff]
      %v189 = vld [vmem:[%s1 + $0x50] sm:$0xff]
      %v190 = vld [vmem:[%s1 + $0x58] sm:$0xff]
      %v191 = vld [vmem:[%s2] sm:$0xff]
      %v192 = vld [vmem:[%s2 + $0x8] sm:$0xff]
      %v193 = vld [vmem:[%s2 + $0x10] sm:$0xff]
      %v194 = vld [vmem:[%s2 + $0x18] sm:$0xff]
      %v195 = vld [vmem:[#allocation2] sm:$0xff]
      %v196 = vld [vmem:[#allocation2 + $0x8] sm:$0xff]
      %v197 = vld [vmem:[#allocation2 + $0x1] sm:$0xff]
      %v198 = vld [vmem:[#allocation2 + $0x9] sm:$0xff]
      %v200 = vsel %vm176, %v183, 0
      %v203 = vsel %vm176, %v184, 0
      %v206 = vsel %vm176, %v185, 0
      %v209 = vsel %vm176, %v186, 0
      %v212 = vsel %vm176, %v197, 0
      %v215 = vsel %vm176, %v198, 0
      %217 = vmatpush.xpose.msra.mxu0 0.0
      %218 = vmatpush.xpose.msra.mxu0 0.0
      %219 = vmatpush.xpose.msra.mxu0 0.0
      %220 = vmatpush.xpose.msra.mxu0 0.0
      %221 = vmatpush.xpose.msra.mxu0 0.0
      %222 = vmatpush.xpose.msra.mxu0 0.0
      %223 = vmatpush.xpose.msra.mxu0 0.0
      %224 = vmatpush.xpose.msra.mxu0 0.0
      %225 = vmatpush.xpose.msra.mxu0 0.0
      %226 = vmatpush.xpose.msra.mxu0 0.0
      %227 = vmatpush.xpose.msra.mxu0 0.0
      %228 = vmatpush.xpose.msra.mxu0 0.0
      %229 = vmatpush.xpose.msra.mxu0 0.0
      %230 = vmatpush.xpose.msra.mxu0 0.0
      %231 = vmatpush.xpose.msra.mxu0 %v215
      %232 = vmatpush.xpose.msra.mxu0 %v212
      %233 = vmatmul.f32.gmra.mxu0 %v200
      %v234 = vpop.f32.mrf.mxu0
      %v235 = vadd.f32 0.0, %v234
      %236 = vmatmul.f32.gmra.mxu0 %v203
      %v237 = vpop.f32.mrf.mxu0
      %v238 = vadd.f32 0.0, %v237
      %239 = vmatmul.f32.gmra.mxu0 %v206
      %v240 = vpop.f32.mrf.mxu0
      %v241 = vadd.f32 0.0, %v240
      %242 = vmatmul.f32.gmra.mxu0 %v209
      %v243 = vpop.f32.mrf.mxu0
      %v244 = vadd.f32 0.0, %v243
      %245 = vdwg.mxu0
      %v247 = vsel %vm176, %v179, 0
      %v250 = vsel %vm176, %v180, 0
      %v253 = vsel %vm176, %v181, 0
      %v256 = vsel %vm176, %v182, 0
      %v259 = vsel %vm176, %v195, 0
      %v262 = vsel %vm176, %v196, 0
      %264 = vmatpush.xpose.msra.mxu0 0.0
      %265 = vmatpush.xpose.msra.mxu0 0.0
      %266 = vmatpush.xpose.msra.mxu0 0.0
      %267 = vmatpush.xpose.msra.mxu0 0.0
      %268 = vmatpush.xpose.msra.mxu0 0.0
      %269 = vmatpush.xpose.msra.mxu0 0.0
      %270 = vmatpush.xpose.msra.mxu0 0.0
      %271 = vmatpush.xpose.msra.mxu0 0.0
      %272 = vmatpush.xpose.msra.mxu0 0.0
      %273 = vmatpush.xpose.msra.mxu0 0.0
      %274 = vmatpush.xpose.msra.mxu0 0.0
      %275 = vmatpush.xpose.msra.mxu0 0.0
      %276 = vmatpush.xpose.msra.mxu0 0.0
      %277 = vmatpush.xpose.msra.mxu0 0.0
      %278 = vmatpush.xpose.msra.mxu0 %v262
      %279 = vmatpush.xpose.msra.mxu0 %v259
      %280 = vmatmul.f32.gmra.mxu0 %v247
      %v281 = vpop.f32.mrf.mxu0
      %v282 = vadd.f32 %v235, %v281
      %283 = vmatmul.f32.gmra.mxu0 %v250
      %v284 = vpop.f32.mrf.mxu0
      %v285 = vadd.f32 %v238, %v284
      %286 = vmatmul.f32.gmra.mxu0 %v253
      %v287 = vpop.f32.mrf.mxu0
      %v288 = vadd.f32 %v241, %v287
      %289 = vmatmul.f32.gmra.mxu0 %v256
      %v290 = vpop.f32.mrf.mxu0
      %v291 = vadd.f32 %v244, %v290
      %292 = vdwg.mxu0
      %v293 = vld [vmem:[#allocation2 + $0x2] sm:$0xff]
      %v294 = vld [vmem:[#allocation2 + $0xa] sm:$0xff]
      %v296 = vsel %vm176, %v187, 0
      %v299 = vsel %vm176, %v188, 0
      %v302 = vsel %vm176, %v189, 0
      %v305 = vsel %vm176, %v190, 0
      %v308 = vsel %vm176, %v293, 0
      %v311 = vsel %vm176, %v294, 0
      %313 = vmatpush.xpose.msra.mxu0 0.0
      %314 = vmatpush.xpose.msra.mxu0 0.0
      %315 = vmatpush.xpose.msra.mxu0 0.0
      %316 = vmatpush.xpose.msra.mxu0 0.0
      %317 = vmatpush.xpose.msra.mxu0 0.0
      %318 = vmatpush.xpose.msra.mxu0 0.0
      %319 = vmatpush.xpose.msra.mxu0 0.0
      %320 = vmatpush.xpose.msra.mxu0 0.0
      %321 = vmatpush.xpose.msra.mxu0 0.0
      %322 = vmatpush.xpose.msra.mxu0 0.0
      %323 = vmatpush.xpose.msra.mxu0 0.0
      %324 = vmatpush.xpose.msra.mxu0 0.0
      %325 = vmatpush.xpose.msra.mxu0 0.0
      %326 = vmatpush.xpose.msra.mxu0 0.0
      %327 = vmatpush.xpose.msra.mxu0 %v311
      %328 = vmatpush.xpose.msra.mxu0 %v308
      %329 = vmatmul.f32.gmra.mxu0 %v296
      %v330 = vpop.f32.mrf.mxu0
      %v331 = vadd.f32 0.0, %v330
      %332 = vmatmul.f32.gmra.mxu0 %v299
      %v333 = vpop.f32.mrf.mxu0
      %v334 = vadd.f32 0.0, %v333
      %335 = vmatmul.f32.gmra.mxu0 %v302
      %v336 = vpop.f32.mrf.mxu0
      %v337 = vadd.f32 0.0, %v336
      %338 = vmatmul.f32.gmra.mxu0 %v305
      %v339 = vpop.f32.mrf.mxu0
      %v340 = vadd.f32 0.0, %v339
      %341 = vdwg.mxu0
      %v342 = vadd.f32 %v282, %v331
      %v343 = vadd.f32 %v285, %v334
      %v344 = vadd.f32 %v288, %v337
      %v345 = vadd.f32 %v291, %v340
      %347 = vset.pattern.permute.xlu0 0
      %348 = vperm.xlu0 %347, %v191
      %v349 = vpop.permute.xlu0 %348
      %352 = vset.pattern.permute.xlu0 0
      %353 = vperm.xlu0 %352, %v192
      %v354 = vpop.permute.xlu0 %353
      %357 = vset.pattern.permute.xlu0 0
      %358 = vperm.xlu0 %357, %v193
      %v359 = vpop.permute.xlu0 %358
      %362 = vset.pattern.permute.xlu0 0
      %363 = vperm.xlu0 %362, %v194
      %v364 = vpop.permute.xlu0 %363
      %v366 = vadd.f32 %v342, %v349
      %v367 = vadd.f32 %v343, %v354
      %v368 = vadd.f32 %v344, %v359
      %v369 = vadd.f32 %v345, %v364
      %vm370 = vcmask 130048
      %371 = vst.msk [vmem:[%s170] sm:$0xff] %vm370, %v366
      %372 = vst.msk [vmem:[%s170 + $0x8] sm:$0xff] %vm370, %v367
      %373 = vst.msk [vmem:[%s170 + $0x10] sm:$0xff] %vm370, %v368
      %374 = vst.msk [vmem:[%s170 + $0x18] sm:$0xff] %vm370, %v369
      %p375 = scmp.lt.s32.totalorder %s14, 1
      %s376 = scalar_select %p375, %s14, 1
      %s377 = smul.addr %s376, 4
      %s378 = smul.addr %s377, 8
      %s379 = scalar_lea.vmem %s3, %s378
      // Predicated region
      $region33: #{cnn_forward.1} parent=31 // pred_check
        %p380 = pneg %p100
      $region34: #{cnn_forward.1} parent=31 // pred_check_branch
        %382 = sbr.rel (%p380) target = $region36
      $region35: #{cnn_forward.1} parent=31 // pred_region
        _
      $region36: #{cnn_forward.1} parent=31 // pred_fallthru
        _
    $region32: #{cnn_forward.1} parent=5 // pred_fallthru
      _
    %p383 = scmp.le.s32.totalorder 2, %s9
    // Predicated region
    $region37: #{cnn_forward.1} parent=5 // pred_check
      %p384 = pneg %p383
    $region38: #{cnn_forward.1} parent=5 // pred_check_branch
      %386 = sbr.rel (%p384) target = $region40
    $region39: #{cnn_forward.1} parent=5 // pred_region
      %s387 = ssub.s32 %s9, 2
      // Predicated region
      $region41: #{cnn_forward.1} parent=39 // pred_check
        %p388 = pneg %p106
      $region42: #{cnn_forward.1} parent=39 // pred_check_branch
        %390 = sbr.rel (%p388) target = $region44
      $region43: #{cnn_forward.1} parent=39 // pred_region
        %p391 = scmp.lt.s32.totalorder %s15, 1
        %s392 = scalar_select %p391, %s15, 1
        %s393 = smul.addr %s392, 4
        %s394 = smul.addr %s393, 8
        %s395 = scalar_lea.vmem %s3, %s394
      $region44: #{cnn_forward.1} parent=39 // pred_fallthru
        _
    $region40: #{cnn_forward.1} parent=5 // pred_fallthru
      _
  $region6: #{cnn_forward.1} parent=0 // loop_footer
    %s13 = sadd.s32 1, %s9
  $region7: #{cnn_forward.1} parent=0 // loop_footer_branch
    %8 = sbr.rel target = $region3
  $region8: #{cnn_forward.1} parent=0 // loop_exit
    _

</llo_original>
